<compile_context>
chip_gen: v6e
topology: v6e:2x2x1
jax: 0.10.0
libtpu: 0.0.40
codegen_flags: <defaults>
</compile_context>

<pallas_src>
import functools

import jax
import jax.numpy as jnp
from jax.experimental import pallas as pl
from jax.experimental.pallas import tpu as pltpu

_HIDDEN = 64
_OUT = 3
_OUT_PAD = 8      # sublane-padded output rows (3 real + 5 zero), lanes carry the batch
_LANES = 128


def _net_sir_kernel(x_ref, w1_ref, b1_ref, w2_ref, b2_ref, w3_ref, b3_ref, o_ref):
    x = x_ref[...]                                                   # (1, TILE_N) f32
    # Layer 1: in_features == 1 -> broadcast multiply-add on the VPU (no K=1 MXU push).
    h1 = jnp.tanh(w1_ref[...] * x + b1_ref[...])                     # (64, TILE_N)
    # Layer 2: MXU matmul, f32 accumulation.  W2 is (out=64, in=64), applied on the left.
    h2 = jnp.tanh(
        jnp.dot(w2_ref[...], h1, preferred_element_type=jnp.float32) + b2_ref[...]
    )                                                                # (64, TILE_N)
    # Layer 3: W3 padded to 8 output rows (rows 3..7 are exactly zero).
    z = jnp.dot(w3_ref[...], h2, preferred_element_type=jnp.float32) + b3_ref[...]
    # Sigmoid as a single EUP transcendental: sigmoid(z) = 0.5 * (tanh(z/2) + 1).
    o_ref[...] = (0.5 * (jnp.tanh(0.5 * z) + 1.0)).astype(o_ref.dtype)   # (8, TILE_N)


@functools.partial(jax.jit, static_argnames=("tile_n",))
def net_sir_forward(x, params, *, tile_n=2048):
    """x: (N, 1) float32.  params: PyTorch-layout weights (out,in) and (out,1) biases."""
    n = x.shape[0]
    aligned_n = max(_LANES, pl.cdiv(n, _LANES) * _LANES)
    # Lane-aligned batch tile, no larger than needed.
    tile_n = max(_LANES, (min(tile_n, aligned_n) // _LANES) * _LANES)
    # v7x megacore: split into >=2 grid steps when the batch is big enough so the
    # "parallel" axis can actually shard across both TensorCores (no-op on v5e/v6e).
    if aligned_n >= 2 * _LANES and aligned_n // tile_n < 2:
        tile_n = pl.cdiv(aligned_n, 2 * _LANES) * _LANES
    n_pad = pl.cdiv(aligned_n, tile_n) * tile_n

    # Present the batch in lanes: x -> (1, n_pad), zero-padded tail columns.
    x_t = jnp.pad(x.T, ((0, 0), (0, n_pad - n)))                     # (1, n_pad)

    w1, b1, w2, b2 = params["w1"], params["b1"], params["w2"], params["b2"]
    # Pad the 3-row output layer to a full 8-sublane tile (padded rows are zero).
    w3p = jnp.pad(params["w3"], ((0, _OUT_PAD - _OUT), (0, 0)))      # (8, 64)
    b3p = jnp.pad(params["b3"], ((0, _OUT_PAD - _OUT), (0, 0)))      # (8, 1)

    # Weights/biases stay VMEM-resident across the batch grid (constant block index).
    resident = lambda a: pl.BlockSpec(a.shape, lambda i: (0, 0))

    out = pl.pallas_call(
        _net_sir_kernel,
        out_shape=jax.ShapeDtypeStruct((_OUT_PAD, n_pad), jnp.float32),
        grid=(n_pad // tile_n,),
        in_specs=[
            pl.BlockSpec((1, tile_n), lambda i: (0, i)),             # x: batch in lanes
            resident(w1), resident(b1),
            resident(w2), resident(b2),
            resident(w3p), resident(b3p),
        ],
        out_specs=pl.BlockSpec((_OUT_PAD, tile_n), lambda i: (0, i)),
        compiler_params=pltpu.CompilerParams(
            dimension_semantics=("parallel",),
        ),
    )(x_t, w1, b1, w2, b2, w3p, b3p)
    # Back to the PyTorch (N, 3) layout; fused into this jitted program.
    return out[:_OUT, :n].T


def init_params(key):
    """Deterministic PyTorch-style init: U(-1/sqrt(fan_in), 1/sqrt(fan_in)).

    Weights are kept in PyTorch (out_features, in_features) layout; biases as (out, 1)
    so they broadcast directly in the transposed (feature-major) kernel formulation.
    """
    def linear(key, fan_in, fan_out):
        kw, kb = jax.random.split(key)
        bound = 1.0 / jnp.sqrt(jnp.float32(fan_in))
        w = jax.random.uniform(kw, (fan_out, fan_in), jnp.float32, -bound, bound)
        b = jax.random.uniform(kb, (fan_out, 1), jnp.float32, -bound, bound)
        return w, b

    k1, k2, k3 = jax.random.split(key, 3)
    w1, b1 = linear(k1, 1, _HIDDEN)
    w2, b2 = linear(k2, _HIDDEN, _HIDDEN)
    w3, b3 = linear(k3, _HIDDEN, _OUT)
    return {"w1": w1, "b1": b1, "w2": w2, "b2": b2, "w3": w3, "b3": b3}


def _reference(x, p):
    h1 = jnp.tanh(x @ p["w1"].T + p["b1"].T)
    h2 = jnp.tanh(h1 @ p["w2"].T + p["b2"].T)
    return jax.nn.sigmoid(h2 @ p["w3"].T + p["b3"].T)


if __name__ == "__main__":
    key = jax.random.PRNGKey(0)
    k_x, k_p = jax.random.split(key)

    N = 8  # small batch of scalar time-points, as the SIR net expects (N, 1) inputs
    x = jax.random.uniform(k_x, (N, 1), jnp.float32)
    params = init_params(k_p)

    out = jax.block_until_ready(net_sir_forward(x, params))

    ref = _reference(x, params)
    assert out.shape == (N, 3)
    assert jnp.allclose(out, ref, atol=1e-5, rtol=1e-5)

    # Also exercise the multi-tile path (grid >= 2, batch padding sliced away).
    N2 = 1000
    x2 = jax.random.uniform(k_x, (N2, 1), jnp.float32)
    out2 = jax.block_until_ready(net_sir_forward(x2, params))
    assert out2.shape == (N2, 3)
    assert jnp.allclose(out2, _reference(x2, params), atol=1e-5, rtol=1e-5)

    print("KERNEL_OK")
</pallas_src>

<mosaic_0001>
module attributes {stable_mosaic.version = 11 : i64} {
  func.func @_net_sir_kernel(%arg0: i32, %arg1: memref<1x128xf32, #tpu.memory_space<vmem>>, %arg2: memref<64x1xf32, #tpu.memory_space<vmem>>, %arg3: memref<64x1xf32, #tpu.memory_space<vmem>>, %arg4: memref<64x64xf32, #tpu.memory_space<vmem>>, %arg5: memref<64x1xf32, #tpu.memory_space<vmem>>, %arg6: memref<8x64xf32, #tpu.memory_space<vmem>>, %arg7: memref<8x1xf32, #tpu.memory_space<vmem>>, %arg8: memref<8x128xf32, #tpu.memory_space<vmem>>) attributes {dimension_semantics = [#tpu.dimension_semantics<parallel>], iteration_bounds = array<i64: 1>, scalar_prefetch = 0 : i64, scratch_operands = 0 : i64, tpu.core_type = #tpu.core_type<tc>, window_params = [{transform_indices = @transform_0, window_bounds = array<i64: 1, 128>}, {pipeline_mode = #tpu.pipeline_mode<synchronous>, transform_indices = @transform_1, window_bounds = array<i64: 64, 1>}, {pipeline_mode = #tpu.pipeline_mode<synchronous>, transform_indices = @transform_2, window_bounds = array<i64: 64, 1>}, {pipeline_mode = #tpu.pipeline_mode<synchronous>, transform_indices = @transform_3, window_bounds = array<i64: 64, 64>}, {pipeline_mode = #tpu.pipeline_mode<synchronous>, transform_indices = @transform_4, window_bounds = array<i64: 64, 1>}, {pipeline_mode = #tpu.pipeline_mode<synchronous>, transform_indices = @transform_5, window_bounds = array<i64: 8, 64>}, {pipeline_mode = #tpu.pipeline_mode<synchronous>, transform_indices = @transform_6, window_bounds = array<i64: 8, 1>}, {transform_indices = @transform_7, window_bounds = array<i64: 8, 128>}]} {
    %c0 = arith.constant 0 : index
    %c0_0 = arith.constant 0 : index
    %0 = vector.load %arg1[%c0, %c0_0] : memref<1x128xf32, #tpu.memory_space<vmem>>, vector<1x128xf32>
    %c0_1 = arith.constant 0 : index
    %c0_2 = arith.constant 0 : index
    %1 = vector.load %arg2[%c0_1, %c0_2] : memref<64x1xf32, #tpu.memory_space<vmem>>, vector<64x1xf32>
    %2 = vector.broadcast %1 : vector<64x1xf32> to vector<64x128xf32>
    %3 = vector.broadcast %0 : vector<1x128xf32> to vector<64x128xf32>
    %4 = arith.mulf %2, %3 : vector<64x128xf32>
    %c0_3 = arith.constant 0 : index
    %c0_4 = arith.constant 0 : index
    %5 = vector.load %arg3[%c0_3, %c0_4] : memref<64x1xf32, #tpu.memory_space<vmem>>, vector<64x1xf32>
    %6 = vector.broadcast %5 : vector<64x1xf32> to vector<64x128xf32>
    %7 = arith.addf %4, %6 : vector<64x128xf32>
    %8 = math.tanh %7 : vector<64x128xf32>
    %c0_5 = arith.constant 0 : index
    %c0_6 = arith.constant 0 : index
    %9 = vector.load %arg4[%c0_5, %c0_6] : memref<64x64xf32, #tpu.memory_space<vmem>>, vector<64x64xf32>
    %cst = arith.constant dense<0.000000e+00> : vector<64x128xf32>
    %10 = tpu.matmul %9, %8, %cst {dimension_numbers = #tpu.dot_dimension_numbers<[1], [0], [0], [1], [0, 0, 1, 1], [], []>} : vector<64x64xf32>, vector<64x128xf32>, vector<64x128xf32> -> vector<64x128xf32>
    %c0_7 = arith.constant 0 : index
    %c0_8 = arith.constant 0 : index
    %11 = vector.load %arg5[%c0_7, %c0_8] : memref<64x1xf32, #tpu.memory_space<vmem>>, vector<64x1xf32>
    %12 = vector.broadcast %11 : vector<64x1xf32> to vector<64x128xf32>
    %13 = arith.addf %10, %12 : vector<64x128xf32>
    %14 = math.tanh %13 : vector<64x128xf32>
    %c0_9 = arith.constant 0 : index
    %c0_10 = arith.constant 0 : index
    %15 = vector.load %arg6[%c0_9, %c0_10] : memref<8x64xf32, #tpu.memory_space<vmem>>, vector<8x64xf32>
    %cst_11 = arith.constant dense<0.000000e+00> : vector<8x128xf32>
    %16 = tpu.matmul %15, %14, %cst_11 {dimension_numbers = #tpu.dot_dimension_numbers<[1], [0], [0], [1], [0, 0, 1, 1], [], []>} : vector<8x64xf32>, vector<64x128xf32>, vector<8x128xf32> -> vector<8x128xf32>
    %c0_12 = arith.constant 0 : index
    %c0_13 = arith.constant 0 : index
    %17 = vector.load %arg7[%c0_12, %c0_13] : memref<8x1xf32, #tpu.memory_space<vmem>>, vector<8x1xf32>
    %18 = vector.broadcast %17 : vector<8x1xf32> to vector<8x128xf32>
    %19 = arith.addf %16, %18 : vector<8x128xf32>
    %cst_14 = arith.constant 5.000000e-01 : f32
    %20 = vector.broadcast %cst_14 : f32 to vector<8x128xf32>
    %21 = arith.mulf %20, %19 : vector<8x128xf32>
    %22 = math.tanh %21 : vector<8x128xf32>
    %cst_15 = arith.constant 1.000000e+00 : f32
    %23 = vector.broadcast %cst_15 : f32 to vector<8x128xf32>
    %24 = arith.addf %22, %23 : vector<8x128xf32>
    %cst_16 = arith.constant 5.000000e-01 : f32
    %25 = vector.broadcast %cst_16 : f32 to vector<8x128xf32>
    %26 = arith.mulf %25, %24 : vector<8x128xf32>
    %c0_17 = arith.constant 0 : index
    %c0_18 = arith.constant 0 : index
    %27 = vector.load %arg8[%c0_17, %c0_18] : memref<8x128xf32, #tpu.memory_space<vmem>>, vector<8x128xf32>
    tpu.vector_store %arg8[%c0_17, %c0_18], %26 {strides = array<i32>} : memref<8x128xf32, #tpu.memory_space<vmem>>, vector<8x128xf32>,
    return
  }
  func.func @transform_0(%arg0: i32) -> (i32, i32) {
    %c0_i32 = arith.constant 0 : i32
    %c0_i32_0 = arith.constant 0 : i32
    return %c0_i32, %arg0 : i32, i32
  }
  func.func @transform_1(%arg0: i32) -> (i32, i32) {
    %c0_i32 = arith.constant 0 : i32
    %c0_i32_0 = arith.constant 0 : i32
    %c0_i32_1 = arith.constant 0 : i32
    return %c0_i32, %c0_i32_0 : i32, i32
  }
  func.func @transform_2(%arg0: i32) -> (i32, i32) {
    %c0_i32 = arith.constant 0 : i32
    %c0_i32_0 = arith.constant 0 : i32
    %c0_i32_1 = arith.constant 0 : i32
    return %c0_i32, %c0_i32_0 : i32, i32
  }
  func.func @transform_3(%arg0: i32) -> (i32, i32) {
    %c0_i32 = arith.constant 0 : i32
    %c0_i32_0 = arith.constant 0 : i32
    %c0_i32_1 = arith.constant 0 : i32
    return %c0_i32, %c0_i32_0 : i32, i32
  }
  func.func @transform_4(%arg0: i32) -> (i32, i32) {
    %c0_i32 = arith.constant 0 : i32
    %c0_i32_0 = arith.constant 0 : i32
    %c0_i32_1 = arith.constant 0 : i32
    return %c0_i32, %c0_i32_0 : i32, i32
  }
  func.func @transform_5(%arg0: i32) -> (i32, i32) {
    %c0_i32 = arith.constant 0 : i32
    %c0_i32_0 = arith.constant 0 : i32
    %c0_i32_1 = arith.constant 0 : i32
    return %c0_i32, %c0_i32_0 : i32, i32
  }
  func.func @transform_6(%arg0: i32) -> (i32, i32) {
    %c0_i32 = arith.constant 0 : i32
    %c0_i32_0 = arith.constant 0 : i32
    %c0_i32_1 = arith.constant 0 : i32
    return %c0_i32, %c0_i32_0 : i32, i32
  }
  func.func @transform_7(%arg0: i32) -> (i32, i32) {
    %c0_i32 = arith.constant 0 : i32
    %c0_i32_0 = arith.constant 0 : i32
    return %c0_i32, %arg0 : i32, i32
  }
}

</mosaic_0001>

<llo_original>
// kernel: net_sir_forward.1
$region0: #{net_sir_forward.1}
  #allocation0 [shape = 'u32[]', space=smem, size = 0x4, offset = 0x4, fixed_abs, tag = 'smem constant byte address 0x4 - core index']
  #allocation1 [shape = 'u32[144,128]{1,0:T(1,128)}', space=vmem, size = 0x12000, scoped, tag = 'internal scratch']
  %s0 = inlined_call_operand.vmem [shape: f32[1,128], index: 0, kind: input, shape index: {}]
  %s1 = inlined_call_operand.vmem [shape: f32[64,1], index: 1, kind: input, shape index: {}]
  %s2 = inlined_call_operand.vmem [shape: f32[64,1], index: 2, kind: input, shape index: {}]
  %s3 = inlined_call_operand.vmem [shape: f32[64,64], index: 3, kind: input, shape index: {}]
  %s4 = inlined_call_operand.vmem [shape: f32[64,1], index: 4, kind: input, shape index: {}]
  %s5 = inlined_call_operand.vmem [shape: f32[8,64], index: 5, kind: input, shape index: {}]
  %s6 = inlined_call_operand.vmem [shape: f32[8,1], index: 6, kind: input, shape index: {}]
  %s7 = inlined_call_operand.vmem [shape: f32[8,128], index: 7, kind: output, shape index: {}]
  %s8 = sld [smem:[#allocation0]]
  $region38: #{net_sir_forward.1} parent=0
    _
  %s10 = ssub.s32 1, %s8
  %s11 = scalar_select 0, %s10, %s8
  // Predicated region
  $region2: #{net_sir_forward.1} parent=0 // pred_check
    _
  $region3: #{net_sir_forward.1} parent=0 // pred_check_branch
    %13 = sbr.rel (0) target = $region5
  $region4: #{net_sir_forward.1} parent=0 // pred_region
    _
  $region5: #{net_sir_forward.1} parent=0 // pred_fallthru
    _
  // Predicated region
  $region6: #{net_sir_forward.1} parent=0 // pred_check
    _
  $region7: #{net_sir_forward.1} parent=0 // pred_check_branch
    %15 = sbr.rel (0) target = $region9
  $region8: #{net_sir_forward.1} parent=0 // pred_region
    _
  $region9: #{net_sir_forward.1} parent=0 // pred_fallthru
    _
  // Predicated region
  $region10: #{net_sir_forward.1} parent=0 // pred_check
    _
  $region11: #{net_sir_forward.1} parent=0 // pred_check_branch
    %17 = sbr.rel (0) target = $region13
  $region12: #{net_sir_forward.1} parent=0 // pred_region
    _
  $region13: #{net_sir_forward.1} parent=0 // pred_fallthru
    _
  // Predicated region
  $region14: #{net_sir_forward.1} parent=0 // pred_check
    _
  $region15: #{net_sir_forward.1} parent=0 // pred_check_branch
    %19 = sbr.rel (0) target = $region17
  $region16: #{net_sir_forward.1} parent=0 // pred_region
    _
  $region17: #{net_sir_forward.1} parent=0 // pred_fallthru
    _
  // Predicated region
  $region18: #{net_sir_forward.1} parent=0 // pred_check
    _
  $region19: #{net_sir_forward.1} parent=0 // pred_check_branch
    %21 = sbr.rel (0) target = $region21
  $region20: #{net_sir_forward.1} parent=0 // pred_region
    _
  $region21: #{net_sir_forward.1} parent=0 // pred_fallthru
    _
  // Predicated region
  $region22: #{net_sir_forward.1} parent=0 // pred_check
    _
  $region23: #{net_sir_forward.1} parent=0 // pred_check_branch
    %23 = sbr.rel (0) target = $region25
  $region24: #{net_sir_forward.1} parent=0 // pred_region
    _
  $region25: #{net_sir_forward.1} parent=0 // pred_fallthru
    _
  // Predicated region
  $region26: #{net_sir_forward.1} parent=0 // pred_check
    _
  $region27: #{net_sir_forward.1} parent=0 // pred_check_branch
    %25 = sbr.rel (0) target = $region29
  $region28: #{net_sir_forward.1} parent=0 // pred_region
    _
  $region29: #{net_sir_forward.1} parent=0 // pred_fallthru
    _
  %v26 = vld [vmem:[%s0] sm:$0x1]
  %v27 = vld [vmem:[%s1] sm:$0xff]
  %v28 = vld [vmem:[%s1 + $0x8] sm:$0xff]
  %v29 = vld [vmem:[%s1 + $0x10] sm:$0xff]
  %v30 = vld [vmem:[%s1 + $0x18] sm:$0xff]
  %v31 = vld [vmem:[%s1 + $0x20] sm:$0xff]
  %v32 = vld [vmem:[%s1 + $0x28] sm:$0xff]
  %v33 = vld [vmem:[%s1 + $0x30] sm:$0xff]
  %v34 = vld [vmem:[%s1 + $0x38] sm:$0xff]
  %36 = vset.pattern.permute.xlu0 0
  %37 = vperm.xlu0 %36, %v27
  %v38 = vpop.permute.xlu0 %37
  %41 = vset.pattern.permute.xlu0 0
  %42 = vperm.xlu0 %41, %v28
  %v43 = vpop.permute.xlu0 %42
  %46 = vset.pattern.permute.xlu0 0
  %47 = vperm.xlu0 %46, %v29
  %v48 = vpop.permute.xlu0 %47
  %51 = vset.pattern.permute.xlu0 0
  %52 = vperm.xlu0 %51, %v30
  %v53 = vpop.permute.xlu0 %52
  %56 = vset.pattern.permute.xlu0 0
  %57 = vperm.xlu0 %56, %v31
  %v58 = vpop.permute.xlu0 %57
  %61 = vset.pattern.permute.xlu0 0
  %62 = vperm.xlu0 %61, %v32
  %v63 = vpop.permute.xlu0 %62
  %66 = vset.pattern.permute.xlu0 0
  %67 = vperm.xlu0 %66, %v33
  %v68 = vpop.permute.xlu0 %67
  %71 = vset.pattern.permute.xlu0 0
  %72 = vperm.xlu0 %71, %v34
  %v73 = vpop.permute.xlu0 %72
  %v76 = vlaneseq
  %v77 = vshrl.u32 %v76, 7
  %v78 = vsub.s32 0, %v77
  %v79 = vrot.slane %v26, %v78
  %v81 = vmul.f32 %v38, %v79
  %v82 = vmul.f32 %v43, %v79
  %v83 = vmul.f32 %v48, %v79
  %v84 = vmul.f32 %v53, %v79
  %v85 = vmul.f32 %v58, %v79
  %v86 = vmul.f32 %v63, %v79
  %v87 = vmul.f32 %v68, %v79
  %v88 = vmul.f32 %v73, %v79
  %v89 = vld [vmem:[%s2] sm:$0xff]
  %v90 = vld [vmem:[%s2 + $0x8] sm:$0xff]
  %v91 = vld [vmem:[%s2 + $0x10] sm:$0xff]
  %v92 = vld [vmem:[%s2 + $0x18] sm:$0xff]
  %v93 = vld [vmem:[%s2 + $0x20] sm:$0xff]
  %v94 = vld [vmem:[%s2 + $0x28] sm:$0xff]
  %v95 = vld [vmem:[%s2 + $0x30] sm:$0xff]
  %v96 = vld [vmem:[%s2 + $0x38] sm:$0xff]
  %98 = vset.pattern.permute.xlu0 0
  %99 = vperm.xlu0 %98, %v89
  %v100 = vpop.permute.xlu0 %99
  %103 = vset.pattern.permute.xlu0 0
  %104 = vperm.xlu0 %103, %v90
  %v105 = vpop.permute.xlu0 %104
  %108 = vset.pattern.permute.xlu0 0
  %109 = vperm.xlu0 %108, %v91
  %v110 = vpop.permute.xlu0 %109
  %113 = vset.pattern.permute.xlu0 0
  %114 = vperm.xlu0 %113, %v92
  %v115 = vpop.permute.xlu0 %114
  %118 = vset.pattern.permute.xlu0 0
  %119 = vperm.xlu0 %118, %v93
  %v120 = vpop.permute.xlu0 %119
  %123 = vset.pattern.permute.xlu0 0
  %124 = vperm.xlu0 %123, %v94
  %v125 = vpop.permute.xlu0 %124
  %128 = vset.pattern.permute.xlu0 0
  %129 = vperm.xlu0 %128, %v95
  %v130 = vpop.permute.xlu0 %129
  %133 = vset.pattern.permute.xlu0 0
  %134 = vperm.xlu0 %133, %v96
  %v135 = vpop.permute.xlu0 %134
  %v137 = vadd.f32 %v81, %v100
  %v138 = vadd.f32 %v82, %v105
  %v139 = vadd.f32 %v83, %v110
  %v140 = vadd.f32 %v84, %v115
  %v141 = vadd.f32 %v85, %v120
  %v142 = vadd.f32 %v86, %v125
  %v143 = vadd.f32 %v87, %v130
  %v144 = vadd.f32 %v88, %v135
  %v145 = vtanh.pop %v137
  %v146 = vtanh.pop %v138
  %v147 = vtanh.pop %v139
  %v148 = vtanh.pop %v140
  %v149 = vtanh.pop %v141
  %v150 = vtanh.pop %v142
  %v151 = vtanh.pop %v143
  %v152 = vtanh.pop %v144
  %v153 = vld [vmem:[%s3] sm:$0xff]
  %v154 = vld [vmem:[%s3 + $0x8] sm:$0xff]
  %v155 = vld [vmem:[%s3 + $0x10] sm:$0xff]
  %v156 = vld [vmem:[%s3 + $0x18] sm:$0xff]
  %v157 = vld [vmem:[%s3 + $0x20] sm:$0xff]
  %v158 = vld [vmem:[%s3 + $0x28] sm:$0xff]
  %v159 = vld [vmem:[%s3 + $0x30] sm:$0xff]
  %v160 = vld [vmem:[%s3 + $0x38] sm:$0xff]
  %v161 = vld [vmem:[%s4] sm:$0xff]
  %v162 = vld [vmem:[%s4 + $0x8] sm:$0xff]
  %v163 = vld [vmem:[%s4 + $0x10] sm:$0xff]
  %v164 = vld [vmem:[%s4 + $0x18] sm:$0xff]
  %v165 = vld [vmem:[%s4 + $0x20] sm:$0xff]
  %v166 = vld [vmem:[%s4 + $0x28] sm:$0xff]
  %v167 = vld [vmem:[%s4 + $0x30] sm:$0xff]
  %v168 = vld [vmem:[%s4 + $0x38] sm:$0xff]
  %170 = vset.pattern.permute.xlu0 0
  %171 = vperm.xlu0 %170, %v161
  %v172 = vpop.permute.xlu0 %171
  %175 = vset.pattern.permute.xlu0 0
  %176 = vperm.xlu0 %175, %v162
  %v177 = vpop.permute.xlu0 %176
  %180 = vset.pattern.permute.xlu0 0
  %181 = vperm.xlu0 %180, %v163
  %v182 = vpop.permute.xlu0 %181
  %185 = vset.pattern.permute.xlu0 0
  %186 = vperm.xlu0 %185, %v164
  %v187 = vpop.permute.xlu0 %186
  %190 = vset.pattern.permute.xlu0 0
  %191 = vperm.xlu0 %190, %v165
  %v192 = vpop.permute.xlu0 %191
  %195 = vset.pattern.permute.xlu0 0
  %196 = vperm.xlu0 %195, %v166
  %v197 = vpop.permute.xlu0 %196
  %200 = vset.pattern.permute.xlu0 0
  %201 = vperm.xlu0 %200, %v167
  %v202 = vpop.permute.xlu0 %201
  %205 = vset.pattern.permute.xlu0 0
  %206 = vperm.xlu0 %205, %v168
  %v207 = vpop.permute.xlu0 %206
  %vm209 = vcmask 523264
  %v211 = vsel %vm209, %v153, 0
  %v214 = vsel %vm209, %v154, 0
  %v217 = vsel %vm209, %v155, 0
  %v220 = vsel %vm209, %v156, 0
  %v223 = vsel %vm209, %v157, 0
  %v226 = vsel %vm209, %v158, 0
  %v229 = vsel %vm209, %v159, 0
  %v232 = vsel %vm209, %v160, 0
  %234 = vmatprep.subr.mxu0 0.0
  %235 = vmatpush1.msra.mxu0 0.0
  %236 = vmatprep.subr.mxu0 0.0
  %237 = vmatpush1.msra.mxu0 0.0
  %238 = vmatprep.subr.mxu0 0.0
  %239 = vmatpush1.msra.mxu0 0.0
  %240 = vmatprep.subr.mxu0 0.0
  %241 = vmatpush1.msra.mxu0 0.0
  %242 = vmatprep.subr.mxu0 0.0
  %243 = vmatpush1.msra.mxu0 0.0
  %244 = vmatprep.subr.mxu0 0.0
  %245 = vmatpush1.msra.mxu0 0.0
  %246 = vmatprep.subr.mxu0 0.0
  %247 = vmatpush1.msra.mxu0 0.0
  %248 = vmatprep.subr.mxu0 0.0
  %249 = vmatpush1.msra.mxu0 0.0
  %250 = vmatprep.subr.mxu0 0.0
  %251 = vmatpush1.msra.mxu0 %v152
  %252 = vmatprep.subr.mxu0 0.0
  %253 = vmatpush1.msra.mxu0 %v151
  %254 = vmatprep.subr.mxu0 0.0
  %255 = vmatpush1.msra.mxu0 %v150
  %256 = vmatprep.subr.mxu0 0.0
  %257 = vmatpush1.msra.mxu0 %v149
  %258 = vmatprep.subr.mxu0 0.0
  %259 = vmatpush1.msra.mxu0 %v148
  %260 = vmatprep.subr.mxu0 0.0
  %261 = vmatpush1.msra.mxu0 %v147
  %262 = vmatprep.subr.mxu0 0.0
  %263 = vmatpush1.msra.mxu0 %v146
  %264 = vmatprep.subr.mxu0 0.0
  %265 = vmatpush1.msra.mxu0 %v145
  %266 = vmatprep.subr.mxu0 0.0
  %267 = vmatpush2.msra.mxu0 0.0
  %268 = vmatprep.subr.mxu0 0.0
  %269 = vmatpush2.msra.mxu0 0.0
  %270 = vmatprep.subr.mxu0 0.0
  %271 = vmatpush2.msra.mxu0 0.0
  %272 = vmatprep.subr.mxu0 0.0
  %273 = vmatpush2.msra.mxu0 0.0
  %274 = vmatprep.subr.mxu0 0.0
  %275 = vmatpush2.msra.mxu0 0.0
  %276 = vmatprep.subr.mxu0 0.0
  %277 = vmatpush2.msra.mxu0 0.0
  %278 = vmatprep.subr.mxu0 0.0
  %279 = vmatpush2.msra.mxu0 0.0
  %280 = vmatprep.subr.mxu0 0.0
  %281 = vmatpush2.msra.mxu0 0.0
  %282 = vmatprep.subr.mxu0 0.0
  %283 = vmatpush2.msra.mxu0 0.0
  %284 = vmatprep.subr.mxu0 0.0
  %285 = vmatpush2.msra.mxu0 0.0
  %286 = vmatprep.subr.mxu0 0.0
  %287 = vmatpush2.msra.mxu0 0.0
  %288 = vmatprep.subr.mxu0 0.0
  %289 = vmatpush2.msra.mxu0 0.0
  %290 = vmatprep.subr.mxu0 0.0
  %291 = vmatpush2.msra.mxu0 0.0
  %292 = vmatprep.subr.mxu0 0.0
  %293 = vmatpush2.msra.mxu0 0.0
  %294 = vmatprep.subr.mxu0 0.0
  %295 = vmatpush2.msra.mxu0 0.0
  %296 = vmatprep.subr.mxu0 0.0
  %297 = vmatpush2.msra.mxu0 0.0
  %298 = vmatprep.mubr.f32.mxu0 0.0
  %299 = vmatmul.mubr.f32.gmra.mxu0 %v211
  %v300 = vpop.f32.mrf.mxu0
  %v301 = vadd.f32 %v172, %v300
  %v302 = vpop.f32.mrf.mxu0
  %303 = vmatprep.mubr.f32.mxu0 0.0
  %304 = vmatmul.mubr.f32.gmra.mxu0 %v214
  %v305 = vpop.f32.mrf.mxu0
  %v306 = vadd.f32 %v177, %v305
  %v307 = vpop.f32.mrf.mxu0
  %308 = vmatprep.mubr.f32.mxu0 0.0
  %309 = vmatmul.mubr.f32.gmra.mxu0 %v217
  %v310 = vpop.f32.mrf.mxu0
  %v311 = vadd.f32 %v182, %v310
  %v312 = vpop.f32.mrf.mxu0
  %313 = vmatprep.mubr.f32.mxu0 0.0
  %314 = vmatmul.mubr.f32.gmra.mxu0 %v220
  %v315 = vpop.f32.mrf.mxu0
  %v316 = vadd.f32 %v187, %v315
  %v317 = vpop.f32.mrf.mxu0
  %318 = vmatprep.mubr.f32.mxu0 0.0
  %319 = vmatmul.mubr.f32.gmra.mxu0 %v223
  %v320 = vpop.f32.mrf.mxu0
  %v321 = vadd.f32 %v192, %v320
  %v322 = vpop.f32.mrf.mxu0
  %323 = vmatprep.mubr.f32.mxu0 0.0
  %324 = vmatmul.mubr.f32.gmra.mxu0 %v226
  %v325 = vpop.f32.mrf.mxu0
  %v326 = vadd.f32 %v197, %v325
  %v327 = vpop.f32.mrf.mxu0
  %328 = vmatprep.mubr.f32.mxu0 0.0
  %329 = vmatmul.mubr.f32.gmra.mxu0 %v229
  %v330 = vpop.f32.mrf.mxu0
  %v331 = vadd.f32 %v202, %v330
  %v332 = vpop.f32.mrf.mxu0
  %333 = vmatprep.mubr.f32.mxu0 0.0
  %334 = vmatmul.mubr.f32.gmra.mxu0 %v232
  %v335 = vpop.f32.mrf.mxu0
  %v336 = vadd.f32 %v207, %v335
  %v337 = vpop.f32.mrf.mxu0
  %338 = vdwg.mxu0
  %v339 = vtanh.pop %v301
  %v340 = vtanh.pop %v306
  %v341 = vtanh.pop %v311
  %v342 = vtanh.pop %v316
  %v343 = vtanh.pop %v321
  %v344 = vtanh.pop %v326
  %v345 = vtanh.pop %v331
  %v346 = vtanh.pop %v336
  %v347 = vld [vmem:[%s5] sm:$0xff]
  %v348 = vld [vmem:[%s6] sm:$0xff]
  %350 = vset.pattern.permute.xlu0 0
  %351 = vperm.xlu0 %350, %v348
  %v352 = vpop.permute.xlu0 %351
  %v355 = vsel %vm209, %v347, 0
  %357 = vmatprep.subr.mxu0 0.0
  %358 = vmatpush1.msra.mxu0 0.0
  %359 = vmatprep.subr.mxu0 0.0
  %360 = vmatpush1.msra.mxu0 0.0
  %361 = vmatprep.subr.mxu0 0.0
  %362 = vmatpush1.msra.mxu0 0.0
  %363 = vmatprep.subr.mxu0 0.0
  %364 = vmatpush1.msra.mxu0 0.0
  %365 = vmatprep.subr.mxu0 0.0
  %366 = vmatpush1.msra.mxu0 0.0
  %367 = vmatprep.subr.mxu0 0.0
  %368 = vmatpush1.msra.mxu0 0.0
  %369 = vmatprep.subr.mxu0 0.0
  %370 = vmatpush1.msra.mxu0 0.0
  %371 = vmatprep.subr.mxu0 0.0
  %372 = vmatpush1.msra.mxu0 0.0
  %373 = vmatprep.subr.mxu0 0.0
  %374 = vmatpush1.msra.mxu0 %v346
  %375 = vmatprep.subr.mxu0 0.0
  %376 = vmatpush1.msra.mxu0 %v345
  %377 = vmatprep.subr.mxu0 0.0
  %378 = vmatpush1.msra.mxu0 %v344
  %379 = vmatprep.subr.mxu0 0.0
  %380 = vmatpush1.msra.mxu0 %v343
  %381 = vmatprep.subr.mxu0 0.0
  %382 = vmatpush1.msra.mxu0 %v342
  %383 = vmatprep.subr.mxu0 0.0
  %384 = vmatpush1.msra.mxu0 %v341
  %385 = vmatprep.subr.mxu0 0.0
  %386 = vmatpush1.msra.mxu0 %v340
  %387 = vmatprep.subr.mxu0 0.0
  %388 = vmatpush1.msra.mxu0 %v339
  %389 = vmatprep.subr.mxu0 0.0
  %390 = vmatpush2.msra.mxu0 0.0
  %391 = vmatprep.subr.mxu0 0.0
  %392 = vmatpush2.msra.mxu0 0.0
  %393 = vmatprep.subr.mxu0 0.0
  %394 = vmatpush2.msra.mxu0 0.0
  %395 = vmatprep.subr.mxu0 0.0
  %396 = vmatpush2.msra.mxu0 0.0
  %397 = vmatprep.subr.mxu0 0.0
  %398 = vmatpush2.msra.mxu0 0.0
  %399 = vmatprep.subr.mxu0 0.0
  %400 = vmatpush2.msra.mxu0 0.0
  %401 = vmatprep.subr.mxu0 0.0
  %402 = vmatpush2.msra.mxu0 0.0
  %403 = vmatprep.subr.mxu0 0.0
  %404 = vmatpush2.msra.mxu0 0.0
  %405 = vmatprep.subr.mxu0 0.0
  %406 = vmatpush2.msra.mxu0 0.0
  %407 = vmatprep.subr.mxu0 0.0
  %408 = vmatpush2.msra.mxu0 0.0
  %409 = vmatprep.subr.mxu0 0.0
  %410 = vmatpush2.msra.mxu0 0.0
  %411 = vmatprep.subr.mxu0 0.0
  %412 = vmatpush2.msra.mxu0 0.0
  %413 = vmatprep.subr.mxu0 0.0
  %414 = vmatpush2.msra.mxu0 0.0
  %415 = vmatprep.subr.mxu0 0.0
  %416 = vmatpush2.msra.mxu0 0.0
  %417 = vmatprep.subr.mxu0 0.0
  %418 = vmatpush2.msra.mxu0 0.0
  %419 = vmatprep.subr.mxu0 0.0
  %420 = vmatpush2.msra.mxu0 0.0
  %421 = vmatprep.mubr.f32.mxu0 0.0
  %422 = vmatmul.mubr.f32.gmra.mxu0 %v355
  %v423 = vpop.f32.mrf.mxu0
  %v424 = vadd.f32 %v352, %v423
  %v425 = vpop.f32.mrf.mxu0
  %426 = vdwg.mxu0
  %v427 = vmul.f32 %v424, 0.5
  %v428 = vtanh.pop %v427
  %v429 = vadd.f32 %v428, 1.0
  %v430 = vmul.f32 %v429, 0.5
  %431 = vst [vmem:[%s7] sm:$0xff] %v430
  // Predicated region
  $region30: #{net_sir_forward.1} parent=0 // pred_check
    _
  $region31: #{net_sir_forward.1} parent=0 // pred_check_branch
    %433 = sbr.rel (0) target = $region33
  $region32: #{net_sir_forward.1} parent=0 // pred_region
    _
  $region33: #{net_sir_forward.1} parent=0 // pred_fallthru
    _
  // Predicated region
  $region34: #{net_sir_forward.1} parent=0 // pred_check
    _
  $region35: #{net_sir_forward.1} parent=0 // pred_check_branch
    %435 = sbr.rel (0) target = $region37
  $region36: #{net_sir_forward.1} parent=0 // pred_region
    _
  $region37: #{net_sir_forward.1} parent=0 // pred_fallthru
    _

</llo_original>
